<compile_context>
chip_gen: v6e
topology: v6e:2x2x1
jax: 0.10.0
libtpu: 0.0.40
codegen_flags: <defaults>
</compile_context>

<pallas_src>
import functools
import math

import jax
import jax.numpy as jnp
import numpy as np
from jax import lax
from jax.experimental import pallas as pl
from jax.experimental.pallas import tpu as pltpu


def _attention_kernel(x_ref, w_ref, b_ref, o_ref, *, d_qkv, compute_dtype,
                      approx_recip):
    """One grid step = (one batch tile) x (one head).

    x_ref : (Bt, N, D)   input tile (reused across the head grid axis)
    w_ref : (D, 3*dq)    this head's fused [Wq^T * scale | Wk^T | Wv^T]
                         (scale = log2(e)/sqrt(d_qkv) folded into the Q part)
    b_ref : (1, 3*dq)    this head's fused bias (f32, Q part pre-scaled)
    o_ref : (Bt, N, dq)  this head's output tile (dense full-block store)
    """
    bt, n, d = x_ref.shape

    # Fused per-head QKV projection as one (Bt*N, D) x (D, 3dq) MXU matmul,
    # f32 accumulation; operands in compute_dtype (bf16 by default).
    x2 = x_ref[...].reshape(bt * n, d).astype(compute_dtype)
    qkv = jnp.dot(x2, w_ref[...], preferred_element_type=jnp.float32)
    qkv = qkv.reshape(bt, n, 3 * d_qkv) + b_ref[...]           # (Bt, N, 3dq) f32

    # Cast the q/k/v slabs to the compute dtype once (no per-head casts).
    q = qkv[..., 0 * d_qkv:1 * d_qkv].astype(compute_dtype)
    k = qkv[..., 1 * d_qkv:2 * d_qkv].astype(compute_dtype)
    v = qkv[..., 2 * d_qkv:3 * d_qkv].astype(compute_dtype)

    # Scores: contract d_qkv of BOTH operands -> the transpose of k is
    # absorbed by the MXU instead of burning an XLU transpose per head.
    s = lax.dot_general(q, k, (((2,), (2,)), ((0,), (0,))),
                        preferred_element_type=jnp.float32)     # (Bt, N, N)

    # Softmax with log2(e) pre-folded into the Q projection -> exp2.
    s = s - jnp.max(s, axis=-1, keepdims=True)
    p = jnp.exp2(s)                                             # unnormalized
    l = jnp.sum(p, axis=-1, keepdims=True)                      # (Bt, N, 1)

    # attn @ V, then deferred softmax normalization on the (N, dq) output
    # (N/dq x less VALU work than normalizing the (N, N) probabilities);
    # the reciprocal goes to the EUP slot.
    o = lax.dot_general(p.astype(compute_dtype), v,
                        (((2,), (1,)), ((0,), (0,))),
                        preferred_element_type=jnp.float32)     # (Bt, N, dq)
    o = o * pl.reciprocal(l, approx=approx_recip)

    o_ref[...] = o.astype(o_ref.dtype)


def _pick_batch_block(batch, seq, d_model):
    """Largest divisor of `batch` whose per-step f32 working set stays modest.

    Amortizes per-grid-step pipeline overhead at small (N, D) without blowing
    up the (Bt, N, N) score tile at large N.
    """
    per_elem = seq * max(seq, 3 * d_model) * 4           # scores / qkv, f32
    bt = max(1, min(batch, (2 * 1024 * 1024) // max(per_elem, 1)))
    while batch % bt:
        bt -= 1
    return bt


def scaled_dot_product_attention(x, wq, bq, wk, bk, wv, bv, d_qkv,
                                 compute_dtype=jnp.bfloat16, batch_block=None):
    """x: (B, N, D); w*: (D, D) torch nn.Linear weights (out, in); b*: (D,).

    compute_dtype: dtype of MXU operands (bf16 default = full-rate MXU, half
    the weight DMA). Accumulation and softmax are always f32.
    """
    B, N, D = x.shape
    assert D % d_qkv == 0, "d_model must be divisible by d_qkv"
    H = D // d_qkv

    is_f32_compute = np.dtype(compute_dtype) == np.dtype(np.float32)

    if batch_block is None:
        batch_block = _pick_batch_block(B, N, D)
    assert B % batch_block == 0, "batch_block must divide the batch"
    Bt = batch_block

    # Score scale 1/sqrt(d_qkv) and the exp->exp2 factor log2(e), both folded
    # into the Q projection weights AND bias at trace time.
    scale = math.log2(math.e) / math.sqrt(d_qkv)

    # Per-head fused projection weight, (H, D, 3*dq), pre-transposed so the
    # kernel computes x @ W (matching nn.Linear's x @ W.T). Head h occupies
    # block h: [Wq_h^T * scale | Wk_h^T | Wv_h^T]. Shipped in compute_dtype.
    wq_h = (wq.T * scale).reshape(D, H, d_qkv)
    wk_h = wk.T.reshape(D, H, d_qkv)
    wv_h = wv.T.reshape(D, H, d_qkv)
    w_fused = jnp.concatenate([wq_h, wk_h, wv_h], axis=2)           # (D, H, 3dq)
    w_fused = jnp.transpose(w_fused, (1, 0, 2)).astype(compute_dtype)  # (H, D, 3dq)

    b_fused = jnp.concatenate(
        [(bq * scale).reshape(H, 1, d_qkv),
         bk.reshape(H, 1, d_qkv),
         bv.reshape(H, 1, d_qkv)], axis=2).astype(jnp.float32)       # (H, 1, 3dq)

    kernel = functools.partial(
        _attention_kernel, d_qkv=d_qkv, compute_dtype=compute_dtype,
        approx_recip=not is_f32_compute)

    # Rough per-step VMEM estimate: double-buffered blocks + f32 temporaries.
    xb = x.dtype.itemsize
    cb = np.dtype(compute_dtype).itemsize
    blocks = 2 * (Bt * N * D * xb                 # x tile
                  + D * 3 * d_qkv * cb            # per-head weight
                  + 3 * d_qkv * 4                 # per-head bias
                  + Bt * N * d_qkv * xb)          # output tile
    temps = (Bt * N * 3 * d_qkv * 4               # f32 qkv accumulator
             + Bt * N * N * 4                     # f32 scores / probabilities
             + Bt * N * D * cb                    # x in compute dtype
             + 4 * Bt * N * d_qkv * 4)            # q/k/v/out temporaries
    est = blocks + temps
    # Raise the scoped VMEM limit only when needed; cap well under v7x's
    # 64 MiB physical VMEM.
    vmem_limit = int(min(est * 3 // 2, 56 * 2 ** 20)) if est > 12 * 2 ** 20 else None

    out4 = pl.pallas_call(
        kernel,
        out_shape=jax.ShapeDtypeStruct((B, H, N, d_qkv), x.dtype),
        grid_spec=pltpu.PrefetchScalarGridSpec(
            num_scalar_prefetch=0,
            grid=(B // Bt, H),        # head axis fastest -> x block stays resident
            in_specs=[
                pl.BlockSpec((Bt, N, D), lambda b, h: (b, 0, 0)),            # x
                pl.BlockSpec((None, D, 3 * d_qkv), lambda b, h: (h, 0, 0)),  # W_h
                pl.BlockSpec((None, 1, 3 * d_qkv), lambda b, h: (h, 0, 0)),  # b_h
            ],
            out_specs=pl.BlockSpec((Bt, None, N, d_qkv),
                                   lambda b, h: (b, h, 0, 0)),
        ),
        compiler_params=pltpu.CompilerParams(
            dimension_semantics=("parallel", "parallel"),
            vmem_limit_bytes=vmem_limit,
        ),
    )(x, w_fused, b_fused)

    # Heads were computed as dense (Bt, N, dq) tiles; restore the interleaved
    # (B, N, D) layout of the PyTorch module (wrapper-side layout plumbing,
    # negligible vs the O(N^2 * D) attention compute).
    return out4.transpose(0, 2, 1, 3).reshape(B, N, D)


def _reference(x, wq, bq, wk, bk, wv, bv, d_qkv):
    """Plain-JAX re-statement of the PyTorch forward, for verification."""
    B, N, D = x.shape
    H = D // d_qkv
    q = (x @ wq.T + bq).reshape(B, N, H, d_qkv).transpose(0, 2, 1, 3)
    k = (x @ wk.T + bk).reshape(B, N, H, d_qkv).transpose(0, 2, 1, 3)
    v = (x @ wv.T + bv).reshape(B, N, H, d_qkv).transpose(0, 2, 1, 3)
    scores = jnp.einsum("bhnd,bhmd->bhnm", q, k) / jnp.sqrt(jnp.float32(d_qkv))
    attn = jax.nn.softmax(scores, axis=-1)
    out = jnp.einsum("bhnm,bhmd->bhnd", attn, v)
    return out.transpose(0, 2, 1, 3).reshape(B, N, D)


if __name__ == "__main__":
    # Small shapes consistent with the module: d_model divisible by d_qkv.
    B, N, d_model, d_qkv = 2, 8, 32, 8

    key = jax.random.PRNGKey(0)
    kx, kwq, kbq, kwk, kbk, kwv, kbv = jax.random.split(key, 7)

    x = jax.random.normal(kx, (B, N, d_model), dtype=jnp.float32)
    # torch nn.Linear shapes: weight (out, in), bias (out,).
    wq = jax.random.normal(kwq, (d_model, d_model), dtype=jnp.float32) * 0.1
    bq = jax.random.normal(kbq, (d_model,), dtype=jnp.float32) * 0.1
    wk = jax.random.normal(kwk, (d_model, d_model), dtype=jnp.float32) * 0.1
    bk = jax.random.normal(kbk, (d_model,), dtype=jnp.float32) * 0.1
    wv = jax.random.normal(kwv, (d_model, d_model), dtype=jnp.float32) * 0.1
    bv = jax.random.normal(kbv, (d_model,), dtype=jnp.float32) * 0.1

    ref = _reference(x, wq, bq, wk, bk, wv, bv, d_qkv)

    # Default path: bf16 MXU operands, f32 accumulation/softmax, approx recip.
    out = scaled_dot_product_attention(x, wq, bq, wk, bk, wv, bv, d_qkv)
    out = jax.block_until_ready(out)
    assert out.shape == (B, N, d_model)
    assert jnp.allclose(out, ref, atol=5e-2, rtol=5e-2), "bf16 mismatch vs reference"

    # Full-precision MXU-operand path (exact reciprocal).
    out_f32 = scaled_dot_product_attention(
        x, wq, bq, wk, bk, wv, bv, d_qkv, compute_dtype=jnp.float32)
    out_f32 = jax.block_until_ready(out_f32)
    assert jnp.allclose(out_f32, ref, atol=2e-3, rtol=2e-3), "f32 mismatch vs reference"

    print("KERNEL_OK")
</pallas_src>

<mosaic_0001>
module attributes {stable_mosaic.version = 11 : i64} {
  func.func @_attention_kernel(%arg0: i32, %arg1: i32, %arg2: memref<2x8x32xf32, #tpu.memory_space<vmem>>, %arg3: memref<1x32x24xbf16, #tpu.memory_space<vmem>>, %arg4: memref<1x1x24xf32, #tpu.memory_space<vmem>>, %arg5: memref<2x1x8x8xf32, #tpu.memory_space<vmem>>) attributes {dimension_semantics = [#tpu.dimension_semantics<parallel>, #tpu.dimension_semantics<parallel>], iteration_bounds = array<i64: 1, 4>, scalar_prefetch = 0 : i64, scratch_operands = 0 : i64, tpu.core_type = #tpu.core_type<tc>, window_params = [{transform_indices = @transform_0, window_bounds = array<i64: 2, 8, 32>}, {transform_indices = @transform_1, window_bounds = array<i64: 1, 32, 24>}, {transform_indices = @transform_2, window_bounds = array<i64: 1, 1, 24>}, {transform_indices = @transform_3, window_bounds = array<i64: 2, 1, 8, 8>}]} {
    %c0 = arith.constant 0 : index
    %c0_0 = arith.constant 0 : index
    %c0_1 = arith.constant 0 : index
    %0 = vector.load %arg2[%c0, %c0_0, %c0_1] : memref<2x8x32xf32, #tpu.memory_space<vmem>>, vector<2x8x32xf32>
    %1 = vector.shape_cast %0 : vector<2x8x32xf32> to vector<16x32xf32>
    %2 = arith.truncf %1 : vector<16x32xf32> to vector<16x32xbf16>
    %c0_2 = arith.constant 0 : index
    %c0_3 = arith.constant 0 : index
    %c0_4 = arith.constant 0 : index
    %3 = vector.load %arg3[%c0_2, %c0_3, %c0_4] : memref<1x32x24xbf16, #tpu.memory_space<vmem>>, vector<1x32x24xbf16>
    %4 = vector.shape_cast %3 : vector<1x32x24xbf16> to vector<32x24xbf16>
    %cst = arith.constant dense<0.000000e+00> : vector<16x24xf32>
    %5 = tpu.matmul %2, %4, %cst {dimension_numbers = #tpu.dot_dimension_numbers<[1], [0], [0], [1], [0, 0, 1, 1], [], []>} : vector<16x32xbf16>, vector<32x24xbf16>, vector<16x24xf32> -> vector<16x24xf32>
    %6 = vector.shape_cast %5 : vector<16x24xf32> to vector<2x8x24xf32>
    %c0_5 = arith.constant 0 : index
    %c0_6 = arith.constant 0 : index
    %c0_7 = arith.constant 0 : index
    %7 = vector.load %arg4[%c0_5, %c0_6, %c0_7] : memref<1x1x24xf32, #tpu.memory_space<vmem>>, vector<1x1x24xf32>
    %8 = vector.shape_cast %7 : vector<1x1x24xf32> to vector<1x24xf32>
    %9 = vector.shape_cast %8 : vector<1x24xf32> to vector<1x1x24xf32>
    %10 = vector.broadcast %9 : vector<1x1x24xf32> to vector<2x8x24xf32>
    %11 = arith.addf %6, %10 : vector<2x8x24xf32>
    %12 = vector.extract_strided_slice %11 {offsets = [0, 0, 0], sizes = [2, 8, 8], strides = [1, 1, 1]} : vector<2x8x24xf32> to vector<2x8x8xf32>
    %13 = arith.truncf %12 : vector<2x8x8xf32> to vector<2x8x8xbf16>
    %14 = vector.extract_strided_slice %11 {offsets = [0, 0, 8], sizes = [2, 8, 8], strides = [1, 1, 1]} : vector<2x8x24xf32> to vector<2x8x8xf32>
    %15 = arith.truncf %14 : vector<2x8x8xf32> to vector<2x8x8xbf16>
    %16 = vector.extract_strided_slice %11 {offsets = [0, 0, 16], sizes = [2, 8, 8], strides = [1, 1, 1]} : vector<2x8x24xf32> to vector<2x8x8xf32>
    %17 = arith.truncf %16 : vector<2x8x8xf32> to vector<2x8x8xbf16>
    %cst_8 = arith.constant dense<0.000000e+00> : vector<2x8x8xf32>
    %18 = tpu.matmul %13, %15, %cst_8 {dimension_numbers = #tpu.dot_dimension_numbers<[2], [2], [1], [1], [0, 0, 0, 1, 1, 1], [0], [0]>} : vector<2x8x8xbf16>, vector<2x8x8xbf16>, vector<2x8x8xf32> -> vector<2x8x8xf32>
    %cst_9 = arith.constant dense<0xFF800000> : vector<2x8xf32>
    %19 = vector.multi_reduction <maximumf>, %18, %cst_9 [2] : vector<2x8x8xf32> to vector<2x8xf32>
    %20 = vector.shape_cast %19 : vector<2x8xf32> to vector<2x8x1xf32>
    %21 = vector.broadcast %20 : vector<2x8x1xf32> to vector<2x8x8xf32>
    %22 = arith.subf %18, %21 : vector<2x8x8xf32>
    %23 = math.exp2 %22 : vector<2x8x8xf32>
    %cst_10 = arith.constant dense<0.000000e+00> : vector<2x8xf32>
    %24 = vector.multi_reduction <add>, %23, %cst_10 [2] : vector<2x8x8xf32> to vector<2x8xf32>
    %25 = vector.shape_cast %24 : vector<2x8xf32> to vector<2x8x1xf32>
    %26 = arith.truncf %23 : vector<2x8x8xf32> to vector<2x8x8xbf16>
    %cst_11 = arith.constant dense<0.000000e+00> : vector<2x8x8xf32>
    %27 = tpu.matmul %26, %17, %cst_11 {dimension_numbers = #tpu.dot_dimension_numbers<[2], [1], [1], [2], [0, 0, 0, 1, 1, 2], [0], [0]>} : vector<2x8x8xbf16>, vector<2x8x8xbf16>, vector<2x8x8xf32> -> vector<2x8x8xf32>
    %28 = tpu.reciprocal %25 {approx = true} : vector<2x8x1xf32> -> vector<2x8x1xf32>
    %29 = vector.broadcast %28 : vector<2x8x1xf32> to vector<2x8x8xf32>
    %30 = arith.mulf %27, %29 : vector<2x8x8xf32>
    %c0_12 = arith.constant 0 : index
    %c0_13 = arith.constant 0 : index
    %c0_14 = arith.constant 0 : index
    %c0_15 = arith.constant 0 : index
    %31 = vector.load %arg5[%c0_12, %c0_13, %c0_14, %c0_15] : memref<2x1x8x8xf32, #tpu.memory_space<vmem>>, vector<2x1x8x8xf32>
    %32 = vector.shape_cast %31 : vector<2x1x8x8xf32> to vector<2x8x8xf32>
    %33 = vector.shape_cast %30 : vector<2x8x8xf32> to vector<2x1x8x8xf32>
    tpu.vector_store %arg5[%c0_12, %c0_13, %c0_14, %c0_15], %33 {strides = array<i32>} : memref<2x1x8x8xf32, #tpu.memory_space<vmem>>, vector<2x1x8x8xf32>,
    return
  }
  func.func @transform_0(%arg0: i32, %arg1: i32) -> (i32, i32, i32) {
    %c0_i32 = arith.constant 0 : i32
    %c0_i32_0 = arith.constant 0 : i32
    %c0_i32_1 = arith.constant 0 : i32
    return %arg0, %c0_i32, %c0_i32_0 : i32, i32, i32
  }
  func.func @transform_1(%arg0: i32, %arg1: i32) -> (i32, i32, i32) {
    %c0_i32 = arith.constant 0 : i32
    %c0_i32_0 = arith.constant 0 : i32
    %c0_i32_1 = arith.constant 0 : i32
    return %arg1, %c0_i32, %c0_i32_0 : i32, i32, i32
  }
  func.func @transform_2(%arg0: i32, %arg1: i32) -> (i32, i32, i32) {
    %c0_i32 = arith.constant 0 : i32
    %c0_i32_0 = arith.constant 0 : i32
    %c0_i32_1 = arith.constant 0 : i32
    return %arg1, %c0_i32, %c0_i32_0 : i32, i32, i32
  }
  func.func @transform_3(%arg0: i32, %arg1: i32) -> (i32, i32, i32, i32) {
    %c0_i32 = arith.constant 0 : i32
    %c0_i32_0 = arith.constant 0 : i32
    %c0_i32_1 = arith.constant 0 : i32
    return %arg0, %arg1, %c0_i32, %c0_i32_0 : i32, i32, i32, i32
  }
}

</mosaic_0001>

<llo_original>
// kernel: tpu_custom_call.1
$region0: #{tpu_custom_call.1}
  #allocation0 [shape = 'u32[]', space=smem, size = 0x4, offset = 0x4, fixed_abs, tag = 'smem constant byte address 0x4 - core index']
  #allocation1 [shape = 'u32[144,128]{1,0:T(1,128)}', space=vmem, size = 0x12000, scoped, tag = 'internal scratch']
  %s0 = inlined_call_operand.vmem [shape: f32[2,8,32], index: 0, kind: input, shape index: {}]
  %s1 = inlined_call_operand.vmem [shape: bf16[4,32,24], index: 1, kind: input, shape index: {}]
  %s2 = inlined_call_operand.vmem [shape: f32[4,1,24], index: 2, kind: input, shape index: {}]
  %s3 = inlined_call_operand.hbm [shape: f32[2,4,8,8], index: 3, kind: output, shape index: {}]
  %s4 = sld [smem:[#allocation0]]
  $region45: #{tpu_custom_call.1} parent=0
    _
  %s6 = ssub.s32 1, %s4
  %s7 = scalar_select 0, %s6, %s4
  $region1: #{tpu_custom_call.1} parent=0
    #allocation2 [shape = 'u8[16384]{0}', space=vmem, size = 0x4000, scoped, tag = 'output window, operand 0']
    #allocation3 [shape = 's32[2]{0}', space=sflag, size = 0x8, scoped, tag = 'scoped memory for tpu_custom_call.1']
    %8 = vsyncpa [#allocation3], 0
    %s9 = scalar_lea.sflag [#allocation3], 1
    %10 = vsyncpa %s9, 0
    loop: start=0, step=1, limit=6
    $region2: #{tpu_custom_call.1} parent=1 // loop_pre_header
      _
    $region3: #{tpu_custom_call.1} parent=1 // loop_header
      %s12 = sphi 0, %s16
      %p13 = scmp.ge.s32.totalorder %s12, 6
      %s19 = sphi 0, %s31
      %s20 = sphi 0, %s27
      %s21 = sphi 0, %s19
      %s22 = sphi 0, %s20
      %s23 = sphi 0, %s21
      %s24 = sphi 0, %s22
      %s34 = sphi 0, %s36
      %s37 = sphi 0, %s34
      %s38 = sphi 0, %s37
      %s54 = sphi 0, %s38
      %s60 = sphi 0, %s62
      %s63 = sphi 0, %s60
      %s64 = sphi 0, %s63
      %s80 = sphi 0, %s64
      %s86 = sphi 0, %s88
      %s89 = sphi 0, %s86
      %s90 = sphi 0, %s89
      %s106 = sphi 0, %s90
      %s114 = sphi 0, %s116
      %s117 = sphi 0, %s114
      %s118 = sphi 0, %s117
      %s134 = sphi 0, %s118
    $region4: #{tpu_custom_call.1} parent=1 // loop_header_branch
      %15 = sbr.rel (%p13) target = $region8
    $region5: #{tpu_custom_call.1} parent=1 // loop_body
      %s17 = ssub.s32 %s12, 1
      %s18 = ssub.s32 %s12, 2
      %s25 = sadd.s32 1, %s20
      %p26 = scmp.ge.s32.totalorder %s25, 4
      %s27 = scalar_select %p26, 0, %s25
      %s28 = sadd.s32 1, %s19
      %s29 = scalar_select %p26, %s28, %s19
      %p30 = scmp.ge.s32.totalorder %s29, 1
      %s31 = scalar_select %p30, 0, %s29
      %s32 = ssub.s32 %s19, %s31
      %p33 = scmp.eq.s32.totalorder %s32, 0
      %s35 = sadd.s32 %s34, 1
      %s36 = scalar_select %p33, %s34, %s35
      %p39 = pneg %p33
      %p40 = scmp.eq.s32.totalorder %s12, 3
      %p41 = por %p39, %p40
      %p42 = scmp.ne.s32.totalorder %s34, %s37
      %p43 = scmp.eq.s32.totalorder %s12, 0
      %p44 = por %p42, %p43
      %p45 = scmp.ne.s32.totalorder %s34, %s37
      %p46 = scmp.eq.s32.totalorder %s17, 3
      %p47 = por %p45, %p46
      %p48 = scmp.ne.s32.totalorder %s37, %s38
      %p49 = scmp.eq.s32.totalorder %s17, 0
      %p50 = por %p48, %p49
      %p51 = scmp.ne.s32.totalorder %s37, %s38
      %p52 = scmp.eq.s32.totalorder %s18, 3
      %p53 = por %p51, %p52
      %p55 = scmp.ne.s32.totalorder %s38, %s54
      %p56 = scmp.eq.s32.totalorder %s18, 0
      %p57 = por %p55, %p56
      %s58 = ssub.s32 %s20, %s27
      %p59 = scmp.eq.s32.totalorder %s58, 0
      %s61 = sadd.s32 %s60, 1
      %s62 = scalar_select %p59, %s60, %s61
      %p65 = pneg %p59
      %p66 = scmp.eq.s32.totalorder %s12, 3
      %p67 = por %p65, %p66
      %p68 = scmp.ne.s32.totalorder %s60, %s63
      %p69 = scmp.eq.s32.totalorder %s12, 0
      %p70 = por %p68, %p69
      %p71 = scmp.ne.s32.totalorder %s60, %s63
      %p72 = scmp.eq.s32.totalorder %s17, 3
      %p73 = por %p71, %p72
      %p74 = scmp.ne.s32.totalorder %s63, %s64
      %p75 = scmp.eq.s32.totalorder %s17, 0
      %p76 = por %p74, %p75
      %p77 = scmp.ne.s32.totalorder %s63, %s64
      %p78 = scmp.eq.s32.totalorder %s18, 3
      %p79 = por %p77, %p78
      %p81 = scmp.ne.s32.totalorder %s64, %s80
      %p82 = scmp.eq.s32.totalorder %s18, 0
      %p83 = por %p81, %p82
      %s84 = ssub.s32 %s20, %s27
      %p85 = scmp.eq.s32.totalorder %s84, 0
      %s87 = sadd.s32 %s86, 1
      %s88 = scalar_select %p85, %s86, %s87
      %p91 = pneg %p85
      %p92 = scmp.eq.s32.totalorder %s12, 3
      %p93 = por %p91, %p92
      %p94 = scmp.ne.s32.totalorder %s86, %s89
      %p95 = scmp.eq.s32.totalorder %s12, 0
      %p96 = por %p94, %p95
      %p97 = scmp.ne.s32.totalorder %s86, %s89
      %p98 = scmp.eq.s32.totalorder %s17, 3
      %p99 = por %p97, %p98
      %p100 = scmp.ne.s32.totalorder %s89, %s90
      %p101 = scmp.eq.s32.totalorder %s17, 0
      %p102 = por %p100, %p101
      %p103 = scmp.ne.s32.totalorder %s89, %s90
      %p104 = scmp.eq.s32.totalorder %s18, 3
      %p105 = por %p103, %p104
      %p107 = scmp.ne.s32.totalorder %s90, %s106
      %p108 = scmp.eq.s32.totalorder %s18, 0
      %p109 = por %p107, %p108
      %s110 = ssub.s32 %s19, %s31
      %s111 = ssub.s32 %s20, %s27
      %s112 = sor.u32 %s110, %s111
      %p113 = scmp.eq.s32.totalorder %s112, 0
      %s115 = sadd.s32 %s114, 1
      %s116 = scalar_select %p113, %s114, %s115
      %p119 = pneg %p113
      %p120 = scmp.eq.s32.totalorder %s12, 3
      %p121 = por %p119, %p120
      %p122 = scmp.ne.s32.totalorder %s114, %s117
      %p123 = scmp.eq.s32.totalorder %s12, 0
      %p124 = por %p122, %p123
      %p125 = scmp.ne.s32.totalorder %s114, %s117
      %p126 = scmp.eq.s32.totalorder %s17, 3
      %p127 = por %p125, %p126
      %p128 = scmp.ne.s32.totalorder %s117, %s118
      %p129 = scmp.eq.s32.totalorder %s17, 0
      %p130 = por %p128, %p129
      %p131 = scmp.ne.s32.totalorder %s117, %s118
      %p132 = scmp.eq.s32.totalorder %s18, 3
      %p133 = por %p131, %p132
      %p135 = scmp.ne.s32.totalorder %s118, %s134
      %p136 = scmp.eq.s32.totalorder %s18, 0
      %p137 = por %p135, %p136
      %p138 = scmp.le.s32.totalorder 1, %s12
      %p139 = scmp.lt.s32.totalorder %s12, 5
      %p140 = pnand %p138, %p139
      %p141 = pneg %p140
      // Predicated region
      $region9: #{tpu_custom_call.1} parent=5 // pred_check
        _
      $region10: #{tpu_custom_call.1} parent=5 // pred_check_branch
        %143 = sbr.rel (%p140) target = $region12
      $region11: #{tpu_custom_call.1} parent=5 // pred_region
        %s144 = ssub.s32 %s12, 1
        // Predicated region
        $region13: #{tpu_custom_call.1} parent=11 // pred_check
          %p145 = pneg %p50
        $region14: #{tpu_custom_call.1} parent=11 // pred_check_branch
          %147 = sbr.rel (%p145) target = $region16
        $region15: #{tpu_custom_call.1} parent=11 // pred_region
          %s148 = smul.u32 2, %s21
          %p149 = scmp.lt.s32.totalorder %s148, 1
          %s150 = scalar_select %p149, %s148, 1
          %s151 = smul.addr %s150, 8
          %s152 = scalar_lea.vmem %s0, %s151
          %s153 = smul.u32 2, %s21
        $region16: #{tpu_custom_call.1} parent=11 // pred_fallthru
          _
      $region12: #{tpu_custom_call.1} parent=5 // pred_fallthru
        _
      %p154 = scmp.lt.s32.totalorder %s12, 4
      // Predicated region
      $region17: #{tpu_custom_call.1} parent=5 // pred_check
        %p155 = pneg %p154
      $region18: #{tpu_custom_call.1} parent=5 // pred_check_branch
        %157 = sbr.rel (%p155) target = $region20
      $region19: #{tpu_custom_call.1} parent=5 // pred_region
        // Predicated region
        $region21: #{tpu_custom_call.1} parent=19 // pred_check
          %p158 = pneg %p70
        $region22: #{tpu_custom_call.1} parent=19 // pred_check_branch
          %160 = sbr.rel (%p158) target = $region24
        $region23: #{tpu_custom_call.1} parent=19 // pred_region
          %p161 = scmp.lt.s32.totalorder %s20, 3
          %s162 = scalar_select %p161, %s20, 3
          %s163 = smul.addr %s162, 4
          %s164 = smul.addr %s163, 4
          %s165 = scalar_lea.vmem %s1, %s164
        $region24: #{tpu_custom_call.1} parent=19 // pred_fallthru
          _
        // Predicated region
        $region25: #{tpu_custom_call.1} parent=19 // pred_check
          %p166 = pneg %p96
        $region26: #{tpu_custom_call.1} parent=19 // pred_check_branch
          %168 = sbr.rel (%p166) target = $region28
        $region27: #{tpu_custom_call.1} parent=19 // pred_region
          %p169 = scmp.lt.s32.totalorder %s20, 3
          %s170 = scalar_select %p169, %s20, 3
          %s171 = scalar_lea.vmem %s2, %s170
        $region28: #{tpu_custom_call.1} parent=19 // pred_fallthru
          _
      $region20: #{tpu_custom_call.1} parent=5 // pred_fallthru
        _
      %p172 = scmp.le.s32.totalorder 1, %s12
      %p173 = scmp.lt.s32.totalorder %s12, 5
      %p174 = pnand %p172, %p173
      %p175 = pneg %p174
      // Predicated region
      $region29: #{tpu_custom_call.1} parent=5 // pred_check
        _
      $region30: #{tpu_custom_call.1} parent=5 // pred_check_branch
        %177 = sbr.rel (%p174) target = $region32
      $region31: #{tpu_custom_call.1} parent=5 // pred_region
        %s178 = ssub.s32 %s12, 1
        %s179 = smul.u32 2, %s21
        %p180 = scmp.lt.s32.totalorder %s179, 1
        %s181 = scalar_select %p180, %s179, 1
        %s182 = smul.addr %s181, 8
        %s183 = scalar_lea.vmem %s0, %s182
        %p184 = pneg %p50
        %p185 = pneg %p47
        %p186 = scmp.lt.s32.totalorder %s22, 3
        %s187 = scalar_select %p186, %s22, 3
        %s188 = smul.addr %s187, 4
        %s189 = smul.addr %s188, 4
        %s190 = scalar_lea.vmem %s1, %s189
        %p191 = pneg %p76
        %p192 = pneg %p73
        %p193 = scmp.lt.s32.totalorder %s22, 3
        %s194 = scalar_select %p193, %s22, 3
        %s195 = scalar_lea.vmem %s2, %s194
        %p196 = pneg %p102
        %p197 = pneg %p99
        %p198 = pneg %p130
        %p199 = pneg %p127
        %s200 = sand.u32 %s117, 1
        %s201 = scalar_lea.sflag [#allocation3], %s200
        %s202 = sand.u32 %s117, 1
        %s203 = smul.addr %s202, 16
        %s204 = scalar_lea.vmem [#allocation2], %s203
        %s205 = smul.u32 2, %s21
        %p206 = scmp.lt.s32.totalorder %s205, 1
        %s207 = scalar_select %p206, %s205, 1
        %s208 = smul.addr %s207, 8
        %s209 = scalar_lea.vmem %s0, %s208
        %s210 = smul.u32 2, %s21
        %p211 = scmp.lt.s32.totalorder %s22, 3
        %s212 = scalar_select %p211, %s22, 3
        %s213 = smul.addr %s212, 4
        %s214 = smul.addr %s213, 4
        %s215 = scalar_lea.vmem %s1, %s214
        %p216 = scmp.lt.s32.totalorder %s22, 3
        %s217 = scalar_select %p216, %s22, 3
        %s218 = scalar_lea.vmem %s2, %s217
        %s219 = smul.u32 2, %s21
        %v221 = vld [vmem:[%s209] sm:$0xff]
        %v222 = vld [vmem:[%s209 + $0x8] sm:$0xff]
        %v223 = vpack.c.bf16 %v222, %v221
        %v224 = vld [vmem:[%s215] sm:$0xf]
        %v225 = vld [vmem:[%s215 + $0x4] sm:$0xf]
        %v226 = vld [vmem:[%s215 + $0x8] sm:$0xf]
        %v227 = vld [vmem:[%s215 + $0xc] sm:$0xf]
        %v232 = vunpack.c.l.b16 %v224
        %v233 = vunpack.c.l.b16 %v225
        %v234 = vunpack.c.l.b16 %v226
        %v235 = vunpack.c.l.b16 %v227
        %v236 = vpack.c.b16 %v233, %v232
        %v237 = vpack.c.b16 %v235, %v234
        %vm240 = vcmask 261120
        %v242 = vsel %vm240, %v223, 0
        %244 = vmatprep.subr.bf16.mxu0 0
        %245 = vmatpush1.bf16.msra.mxu0 0
        %246 = vmatprep.subr.bf16.mxu0 0
        %247 = vmatpush1.bf16.msra.mxu0 0
        %248 = vmatprep.subr.bf16.mxu0 0
        %249 = vmatpush1.bf16.msra.mxu0 0
        %250 = vmatprep.subr.bf16.mxu0 0
        %251 = vmatpush1.bf16.msra.mxu0 0
        %252 = vmatprep.subr.bf16.mxu0 0
        %253 = vmatpush1.bf16.msra.mxu0 0
        %254 = vmatprep.subr.bf16.mxu0 0
        %255 = vmatpush1.bf16.msra.mxu0 0
        %256 = vmatprep.subr.bf16.mxu0 0
        %257 = vmatpush1.bf16.msra.mxu0 %v237
        %258 = vmatprep.subr.bf16.mxu0 0
        %259 = vmatpush1.bf16.msra.mxu0 %v236
        %260 = vmatprep.subr.bf16.mxu0 0
        %261 = vmatpush2.bf16.msra.mxu0 0
        %262 = vmatprep.subr.bf16.mxu0 0
        %263 = vmatpush2.bf16.msra.mxu0 0
        %264 = vmatprep.subr.bf16.mxu0 0
        %265 = vmatpush2.bf16.msra.mxu0 0
        %266 = vmatprep.subr.bf16.mxu0 0
        %267 = vmatpush2.bf16.msra.mxu0 0
        %268 = vmatprep.subr.bf16.mxu0 0
        %269 = vmatpush2.bf16.msra.mxu0 0
        %270 = vmatprep.subr.bf16.mxu0 0
        %271 = vmatpush2.bf16.msra.mxu0 0
        %272 = vmatprep.subr.bf16.mxu0 0
        %273 = vmatpush2.bf16.msra.mxu0 0
        %274 = vmatprep.subr.bf16.mxu0 0
        %275 = vmatpush2.bf16.msra.mxu0 0
        %276 = vmatprep.mubr.bf16.mxu0 0
        %277 = vmatmul.mubr.bf16.gmra.mxu0 %v242
        %v278 = vpop.f32.mrf.mxu0
        %v279 = vadd.f32 0.0, %v278
        %v280 = vpop.f32.mrf.mxu0
        %v281 = vpop.f32.mrf.mxu0
        %v282 = vadd.f32 0.0, %v281
        %v283 = vpop.f32.mrf.mxu0
        %284 = vdwg.mxu0
        %v285 = vld [vmem:[%s218] sm:$0x1]
        %v287 = vlaneseq
        %v288 = vshrl.u32 %v287, 7
        %v289 = vsub.s32 0, %v288
        %v290 = vrot.slane %v285, %v289
        %v292 = vadd.f32 %v279, %v290
        %v293 = vadd.f32 %v282, %v290
        %v294 = vpack.c.bf16 %v292, %v292
        %v295 = vpack.c.bf16 %v293, %v293
        %297 = vrot.lane.b32.xlu0 %v294, 120
        %v298 = vpop.permute.xlu0 %297
        %vm299 = vcmask 64512
        %v301 = vsel %vm299, %v294, 0
        %v304 = vsel %vm299, %v298, 0
        %306 = vmatprep.subr.bf16.mxu0 0
        %307 = vmatpush1.bf16.xpose.msra.mxu0 0
        %308 = vmatprep.subr.bf16.mxu0 0
        %309 = vmatpush1.bf16.xpose.msra.mxu0 0
        %310 = vmatprep.subr.bf16.mxu0 0
        %311 = vmatpush1.bf16.xpose.msra.mxu0 0
        %312 = vmatprep.subr.bf16.mxu0 0
        %313 = vmatpush1.bf16.xpose.msra.mxu0 0
        %314 = vmatprep.subr.bf16.mxu0 0
        %315 = vmatpush1.bf16.xpose.msra.mxu0 0
        %316 = vmatprep.subr.bf16.mxu0 0
        %317 = vmatpush1.bf16.xpose.msra.mxu0 0
        %318 = vmatprep.subr.bf16.mxu0 0
        %319 = vmatpush1.bf16.xpose.msra.mxu0 0
        %320 = vmatprep.subr.bf16.mxu0 0
        %321 = vmatpush1.bf16.xpose.msra.mxu0 %v304
        %322 = vmatprep.subr.bf16.mxu0 0
        %323 = vmatpush2.bf16.xpose.msra.mxu0 0
        %324 = vmatprep.subr.bf16.mxu0 0
        %325 = vmatpush2.bf16.xpose.msra.mxu0 0
        %326 = vmatprep.subr.bf16.mxu0 0
        %327 = vmatpush2.bf16.xpose.msra.mxu0 0
        %328 = vmatprep.subr.bf16.mxu0 0
        %329 = vmatpush2.bf16.xpose.msra.mxu0 0
        %330 = vmatprep.subr.bf16.mxu0 0
        %331 = vmatpush2.bf16.xpose.msra.mxu0 0
        %332 = vmatprep.subr.bf16.mxu0 0
        %333 = vmatpush2.bf16.xpose.msra.mxu0 0
        %334 = vmatprep.subr.bf16.mxu0 0
        %335 = vmatpush2.bf16.xpose.msra.mxu0 0
        %336 = vmatprep.subr.bf16.mxu0 0
        %337 = vmatpush2.bf16.xpose.msra.mxu0 0
        %338 = vmatprep.mubr.bf16.mxu0 0
        %339 = vmatmul.mubr.bf16.gmra.mxu0 %v301
        %v340 = vpop.f32.mrf.mxu0
        %v341 = vadd.f32 0.0, %v340
        %v342 = vpop.f32.mrf.mxu0
        %v343 = vpop.f32.mrf.mxu0
        %v344 = vpop.f32.mrf.mxu0
        %345 = vdwg.mxu0
        %347 = vrot.lane.b32.xlu0 %v295, 120
        %v348 = vpop.permute.xlu0 %347
        %v350 = vsel %vm299, %v295, 0
        %v353 = vsel %vm299, %v348, 0
        %355 = vmatprep.subr.bf16.mxu0 0
        %356 = vmatpush1.bf16.xpose.msra.mxu0 0
        %357 = vmatprep.subr.bf16.mxu0 0
        %358 = vmatpush1.bf16.xpose.msra.mxu0 0
        %359 = vmatprep.subr.bf16.mxu0 0
        %360 = vmatpush1.bf16.xpose.msra.mxu0 0
        %361 = vmatprep.subr.bf16.mxu0 0
        %362 = vmatpush1.bf16.xpose.msra.mxu0 0
        %363 = vmatprep.subr.bf16.mxu0 0
        %364 = vmatpush1.bf16.xpose.msra.mxu0 0
        %365 = vmatprep.subr.bf16.mxu0 0
        %366 = vmatpush1.bf16.xpose.msra.mxu0 0
        %367 = vmatprep.subr.bf16.mxu0 0
        %368 = vmatpush1.bf16.xpose.msra.mxu0 0
        %369 = vmatprep.subr.bf16.mxu0 0
        %370 = vmatpush1.bf16.xpose.msra.mxu0 %v353
        %371 = vmatprep.subr.bf16.mxu0 0
        %372 = vmatpush2.bf16.xpose.msra.mxu0 0
        %373 = vmatprep.subr.bf16.mxu0 0
        %374 = vmatpush2.bf16.xpose.msra.mxu0 0
        %375 = vmatprep.subr.bf16.mxu0 0
        %376 = vmatpush2.bf16.xpose.msra.mxu0 0
        %377 = vmatprep.subr.bf16.mxu0 0
        %378 = vmatpush2.bf16.xpose.msra.mxu0 0
        %379 = vmatprep.subr.bf16.mxu0 0
        %380 = vmatpush2.bf16.xpose.msra.mxu0 0
        %381 = vmatprep.subr.bf16.mxu0 0
        %382 = vmatpush2.bf16.xpose.msra.mxu0 0
        %383 = vmatprep.subr.bf16.mxu0 0
        %384 = vmatpush2.bf16.xpose.msra.mxu0 0
        %385 = vmatprep.subr.bf16.mxu0 0
        %386 = vmatpush2.bf16.xpose.msra.mxu0 0
        %387 = vmatprep.mubr.bf16.mxu0 0
        %388 = vmatmul.mubr.bf16.gmra.mxu0 %v350
        %v389 = vpop.f32.mrf.mxu0
        %v390 = vadd.f32 0.0, %v389
        %v391 = vpop.f32.mrf.mxu0
        %v392 = vpop.f32.mrf.mxu0
        %v393 = vpop.f32.mrf.mxu0
        %394 = vdwg.mxu0
        %v395 = vsel %vm299, %v341, -inf
        %396 = vmax.xlane.f32.xlu0 %v395
        %v397 = vpop.xlane.xlu0 %396
        %v398 = vsel %vm299, %v390, -inf
        %399 = vmax.xlane.f32.xlu0 %v398
        %v400 = vpop.xlane.xlu0 %399
        %v401 = vsub.f32 %v341, %v397
        %v402 = vsub.f32 %v390, %v400
        %v403 = vpow.pop %v401
        %v404 = vpow.pop %v402
        %v405 = vsel %vm299, %v403, 0.0
        %406 = vadd.xlane.f32.xlu0 %v405
        %v407 = vpop.xlane.xlu0 %406
        %v408 = vsel %vm299, %v404, 0.0
        %409 = vadd.xlane.f32.xlu0 %v408
        %v410 = vpop.xlane.xlu0 %409
        %v411 = vpack.c.bf16 %v403, %v403
        %v412 = vpack.c.bf16 %v404, %v404
        %413 = vrot.lane.b32.xlu0 %v294, 112
        %v414 = vpop.permute.xlu0 %413
        %v416 = vsel %vm299, %v411, 0
        %vm418 = vcmask 1043456
        %v420 = vsel %vm418, %v414, 0
        %422 = vmatprep.subr.bf16.mxu0 0
        %423 = vmatpush1.bf16.msra.mxu0 0
        %424 = vmatprep.subr.bf16.mxu0 0
        %425 = vmatpush1.bf16.msra.mxu0 0
        %426 = vmatprep.subr.bf16.mxu0 0
        %427 = vmatpush1.bf16.msra.mxu0 0
        %428 = vmatprep.subr.bf16.mxu0 0
        %429 = vmatpush1.bf16.msra.mxu0 0
        %430 = vmatprep.subr.bf16.mxu0 0
        %431 = vmatpush1.bf16.msra.mxu0 0
        %432 = vmatprep.subr.bf16.mxu0 0
        %433 = vmatpush1.bf16.msra.mxu0 0
        %434 = vmatprep.subr.bf16.mxu0 0
        %435 = vmatpush1.bf16.msra.mxu0 0
        %436 = vmatprep.subr.bf16.mxu0 0
        %437 = vmatpush1.bf16.msra.mxu0 %v420
        %438 = vmatprep.subr.bf16.mxu0 0
        %439 = vmatpush2.bf16.msra.mxu0 0
        %440 = vmatprep.subr.bf16.mxu0 0
        %441 = vmatpush2.bf16.msra.mxu0 0
        %442 = vmatprep.subr.bf16.mxu0 0
        %443 = vmatpush2.bf16.msra.mxu0 0
        %444 = vmatprep.subr.bf16.mxu0 0
        %445 = vmatpush2.bf16.msra.mxu0 0
        %446 = vmatprep.subr.bf16.mxu0 0
        %447 = vmatpush2.bf16.msra.mxu0 0
        %448 = vmatprep.subr.bf16.mxu0 0
        %449 = vmatpush2.bf16.msra.mxu0 0
        %450 = vmatprep.subr.bf16.mxu0 0
        %451 = vmatpush2.bf16.msra.mxu0 0
        %452 = vmatprep.subr.bf16.mxu0 0
        %453 = vmatpush2.bf16.msra.mxu0 0
        %454 = vmatprep.mubr.bf16.mxu0 0
        %455 = vmatmul.mubr.bf16.gmra.mxu0 %v416
        %v456 = vpop.f32.mrf.mxu0
        %v457 = vadd.f32 0.0, %v456
        %v458 = vpop.f32.mrf.mxu0
        %v459 = vpop.f32.mrf.mxu0
        %v460 = vpop.f32.mrf.mxu0
        %461 = vdwg.mxu0
        %462 = vrot.lane.b32.xlu0 %v295, 112
        %v463 = vpop.permute.xlu0 %462
        %v465 = vsel %vm299, %v412, 0
        %v468 = vsel %vm418, %v463, 0
        %470 = vmatprep.subr.bf16.mxu0 0
        %471 = vmatpush1.bf16.msra.mxu0 0
        %472 = vmatprep.subr.bf16.mxu0 0
        %473 = vmatpush1.bf16.msra.mxu0 0
        %474 = vmatprep.subr.bf16.mxu0 0
        %475 = vmatpush1.bf16.msra.mxu0 0
        %476 = vmatprep.subr.bf16.mxu0 0
        %477 = vmatpush1.bf16.msra.mxu0 0
        %478 = vmatprep.subr.bf16.mxu0 0
        %479 = vmatpush1.bf16.msra.mxu0 0
        %480 = vmatprep.subr.bf16.mxu0 0
        %481 = vmatpush1.bf16.msra.mxu0 0
        %482 = vmatprep.subr.bf16.mxu0 0
        %483 = vmatpush1.bf16.msra.mxu0 0
        %484 = vmatprep.subr.bf16.mxu0 0
        %485 = vmatpush1.bf16.msra.mxu0 %v468
        %486 = vmatprep.subr.bf16.mxu0 0
        %487 = vmatpush2.bf16.msra.mxu0 0
        %488 = vmatprep.subr.bf16.mxu0 0
        %489 = vmatpush2.bf16.msra.mxu0 0
        %490 = vmatprep.subr.bf16.mxu0 0
        %491 = vmatpush2.bf16.msra.mxu0 0
        %492 = vmatprep.subr.bf16.mxu0 0
        %493 = vmatpush2.bf16.msra.mxu0 0
        %494 = vmatprep.subr.bf16.mxu0 0
        %495 = vmatpush2.bf16.msra.mxu0 0
        %496 = vmatprep.subr.bf16.mxu0 0
        %497 = vmatpush2.bf16.msra.mxu0 0
        %498 = vmatprep.subr.bf16.mxu0 0
        %499 = vmatpush2.bf16.msra.mxu0 0
        %500 = vmatprep.subr.bf16.mxu0 0
        %501 = vmatpush2.bf16.msra.mxu0 0
        %502 = vmatprep.mubr.bf16.mxu0 0
        %503 = vmatmul.mubr.bf16.gmra.mxu0 %v465
        %v504 = vpop.f32.mrf.mxu0
        %v505 = vadd.f32 0.0, %v504
        %v506 = vpop.f32.mrf.mxu0
        %v507 = vpop.f32.mrf.mxu0
        %v508 = vpop.f32.mrf.mxu0
        %509 = vdwg.mxu0
        %v510 = vrcp.pop %v407
        %v511 = vrcp.pop %v410
        %v512 = vmul.f32 %v457, %v510
        %v513 = vmul.f32 %v505, %v511
        %514 = vst.msk [vmem:[%s204] sm:$0xff] %vm299, %v512
        %515 = vst.msk [vmem:[%s204 + $0x8] sm:$0xff] %vm299, %v513
        %s516 = sand.u32 %s117, 1
        %s517 = scalar_lea.sflag [#allocation3], %s516
        %s518 = sand.u32 %s117, 1
        %s519 = smul.addr %s518, 16
        %s520 = scalar_lea.vmem [#allocation2], %s519
        // Predicated region
        $region33: #{tpu_custom_call.1} parent=31 // pred_check
          %p521 = pneg %p127
        $region34: #{tpu_custom_call.1} parent=31 // pred_check_branch
          %523 = sbr.rel (%p521) target = $region36
        $region35: #{tpu_custom_call.1} parent=31 // pred_region
          %s524 = smul.u32 2, %s21
          %s526 = ssub.s32 256, 256
          %527 = vsyncadd %s517, %s526
          %s528 = smul.addr %s524, 4
          %s529 = sadd.s32 %s22, %s528
          %s530 = smul.addr %s529, 128
          %s531 = scalar_lea.hbm %s3, %s530
          %s532 = sshll.u32 %s520, 4
          %s533 = int_to_ptr.vmem [resolvable:$true] %s532
          %538 = dma.vmem_to_hbm [thread:$0]  %s533, 256, %s531, %s517, 128, 512, 8
        $region36: #{tpu_custom_call.1} parent=31 // pred_fallthru
          _
      $region32: #{tpu_custom_call.1} parent=5 // pred_fallthru
        _
      %p539 = scmp.le.s32.totalorder 2, %s12
      // Predicated region
      $region37: #{tpu_custom_call.1} parent=5 // pred_check
        %p540 = pneg %p539
      $region38: #{tpu_custom_call.1} parent=5 // pred_check_branch
        %542 = sbr.rel (%p540) target = $region40
      $region39: #{tpu_custom_call.1} parent=5 // pred_region
        %s543 = ssub.s32 %s12, 2
        // Predicated region
        $region41: #{tpu_custom_call.1} parent=39 // pred_check
          %p544 = pneg %p133
        $region42: #{tpu_custom_call.1} parent=39 // pred_check_branch
          %546 = sbr.rel (%p544) target = $region44
        $region43: #{tpu_custom_call.1} parent=39 // pred_region
          %s547 = sand.u32 %s118, 1
          %s548 = scalar_lea.sflag [#allocation3], %s547
          %s549 = sand.u32 %s118, 1
          %s550 = smul.addr %s549, 16
          %s551 = scalar_lea.vmem [#allocation2], %s550
          %552 = dma.done %s548, 256
        $region44: #{tpu_custom_call.1} parent=39 // pred_fallthru
          _
      $region40: #{tpu_custom_call.1} parent=5 // pred_fallthru
        _
    $region6: #{tpu_custom_call.1} parent=1 // loop_footer
      %s16 = sadd.s32 1, %s12
    $region7: #{tpu_custom_call.1} parent=1 // loop_footer_branch
      %11 = sbr.rel target = $region3
    $region8: #{tpu_custom_call.1} parent=1 // loop_exit
      _
    %553 = vsyncpa [#allocation3], 1
    %s554 = scalar_lea.sflag [#allocation3], 1
    %555 = vsyncpa %s554, 1

</llo_original>
